<compile_context>
chip_gen: v7x
topology: tpu7x:2x2x1
jax: 0.10.0
libtpu: 0.0.40
codegen_flags: <defaults>
</compile_context>

<pallas_src>
import jax
import jax.numpy as jnp
from jax.experimental import pallas as pl
from jax.experimental.pallas import tpu as pltpu

B = 2
SEQ_LEN = 8          # = config.maxlen + 1 (maxlen chosen as 7 for this synthetic run)
CONV_W = 200         # fixed by nn.Conv2d(1, 1, (1, 200))
H1 = 512             # fc1 out_features
H_DIM = 100          # default h_dim
H_PAD = 128          # lane-padded h_dim
OUT_DIM = 10         # default out_dim
OUT_PAD = 128        # lane-padded out_dim

# Lane-aligned offsets inside the single packed (1, BCAT_W) f32 bias slab.
B1_OFF = 0                     # fc1 bias  (512 lanes)
B2_OFF = B1_OFF + H1           # fc2 bias  (128 lanes, padded from 100)
B3_OFF = B2_OFF + H_PAD        # fc3 bias  (128 lanes, padded from 10)
BC_OFF = B3_OFF + OUT_PAD      # conv bias (1 lane)
BCAT_W = BC_OFF + 128          # 896 lanes total (multiple of 128)


def out_cnn_kernel(x_ref, wc_ref, w1_ref, w2_ref, w3_ref, bcat_ref, out_ref):
    # Conv2d(1, 1, (1, W)) over (B, S, W): lane-dense VPU broadcast-multiply +
    # one XLU lane reduction, kept in f32 (tiny work; exact vs. the reference).
    h0 = jnp.sum(x_ref[...] * wc_ref[...], axis=-1)               # (B, S) f32
    h0 = jnp.maximum(h0 + bcat_ref[:, BC_OFF:BC_OFF + 1], 0.0)    # conv bias + ReLU

    # fc1 + ReLU   (dropout p=0 is identity)
    h1 = jnp.dot(h0.astype(jnp.bfloat16), w1_ref[...],
                 preferred_element_type=jnp.float32)              # (B, 512) f32
    h1 = jnp.maximum(h1 + bcat_ref[:, B1_OFF:B1_OFF + H1], 0.0)

    # fc2 + ReLU   (output lane-padded to 128; padded columns are exactly zero)
    h2 = jnp.dot(h1.astype(jnp.bfloat16), w2_ref[...],
                 preferred_element_type=jnp.float32)              # (B, 128) f32
    h2 = jnp.maximum(h2 + bcat_ref[:, B2_OFF:B2_OFF + H_PAD], 0.0)

    # fc3 (no activation): lane-dense (B, 128) unmasked store
    out = jnp.dot(h2.astype(jnp.bfloat16), w3_ref[...],
                  preferred_element_type=jnp.float32)             # (B, 128) f32
    out_ref[...] = out + bcat_ref[:, B3_OFF:B3_OFF + OUT_PAD]


def pack_params(params):
    """One-time packing / casting of the module parameters.

    Call this when parameters are created or updated and cache the result; the
    per-call hot path (out_cnn_forward) then contains no preprocessing ops."""
    wc, bc, w1, b1, w2, b2, w3, b3 = params

    wc_k = wc.reshape(1, 1, CONV_W).astype(jnp.float32)                 # lane-dense filter
    w1_k = w1.astype(jnp.bfloat16)                                      # (S, 512)
    w2_k = jnp.zeros((H1, H_PAD), jnp.bfloat16)                         # (512, 128)
    w2_k = w2_k.at[:, :H_DIM].set(w2.astype(jnp.bfloat16))
    w3_k = jnp.zeros((H_PAD, OUT_PAD), jnp.bfloat16)                    # (128, 128)
    w3_k = w3_k.at[:H_DIM, :OUT_DIM].set(w3.astype(jnp.bfloat16))

    bcat = jnp.zeros((1, BCAT_W), jnp.float32)                          # all biases, one DMA
    bcat = bcat.at[:, B1_OFF:B1_OFF + H1].set(b1)
    bcat = bcat.at[:, B2_OFF:B2_OFF + H_DIM].set(b2)
    bcat = bcat.at[:, B3_OFF:B3_OFF + OUT_DIM].set(b3)
    bcat = bcat.at[:, BC_OFF:BC_OFF + 1].set(bc)

    return (wc_k, w1_k, w2_k, w3_k, bcat)


def out_cnn_forward(x, packed):
    """Hot path: one fused Pallas kernel, grid-free, fully VMEM resident."""
    wc_k, w1_k, w2_k, w3_k, bcat = packed
    Bx = x.shape[0]
    vmem = pl.BlockSpec(memory_space=pltpu.MemorySpace.VMEM)

    out_pad = pl.pallas_call(
        out_cnn_kernel,
        out_shape=jax.ShapeDtypeStruct((Bx, OUT_PAD), jnp.float32),
        in_specs=[vmem] * 6,
        out_specs=vmem,
    )(x, wc_k, w1_k, w2_k, w3_k, bcat)

    return out_pad[:, :OUT_DIM]


def ref_forward(x, params):
    """Plain-JAX f32 reference matching the PyTorch forward."""
    wc, bc, w1, b1, w2, b2, w3, b3 = params
    h0 = jax.nn.relu(jnp.einsum("bsw,w->bs", x, wc[0]) + bc[0, 0])
    h1 = jax.nn.relu(h0 @ w1 + b1)
    h2 = jax.nn.relu(h1 @ w2 + b2)
    return h2 @ w3 + b3


def make_params(key):
    ks = jax.random.split(key, 8)
    scale = 0.05
    wc = scale * jax.random.normal(ks[0], (1, CONV_W), jnp.float32)       # conv1 weight (flattened)
    bc = scale * jax.random.normal(ks[1], (1, 1), jnp.float32)            # conv1 bias
    w1 = scale * jax.random.normal(ks[2], (SEQ_LEN, H1), jnp.float32)     # fc1 weight (in, out)
    b1 = scale * jax.random.normal(ks[3], (1, H1), jnp.float32)
    w2 = scale * jax.random.normal(ks[4], (H1, H_DIM), jnp.float32)       # fc2 weight (in, out)
    b2 = scale * jax.random.normal(ks[5], (1, H_DIM), jnp.float32)
    w3 = scale * jax.random.normal(ks[6], (H_DIM, OUT_DIM), jnp.float32)  # fc3 weight (in, out)
    b3 = scale * jax.random.normal(ks[7], (1, OUT_DIM), jnp.float32)
    return (wc, bc, w1, b1, w2, b2, w3, b3)


if __name__ == "__main__":
    key = jax.random.PRNGKey(0)
    k_x, k_p = jax.random.split(key)

    x = jax.random.normal(k_x, (B, SEQ_LEN, CONV_W), jnp.float32)
    params = make_params(k_p)
    packed = jax.block_until_ready(pack_params(params))   # one-time, cached

    fwd = jax.jit(out_cnn_forward)
    out = jax.block_until_ready(fwd(x, packed))
    ref = jax.block_until_ready(ref_forward(x, params))

    assert out.shape == (B, OUT_DIM), out.shape
    # conv is exact f32; only the fc matmul operands are bf16 (f32 accumulation).
    assert jnp.allclose(out, ref, rtol=5e-2, atol=1e-2), (
        f"max abs diff = {jnp.max(jnp.abs(out - ref))}")

    print("KERNEL_OK")
</pallas_src>

<mosaic_0001>
module attributes {stable_mosaic.version = 11 : i64} {
  func.func @out_cnn_kernel(%arg0: memref<2x8x200xf32, #tpu.memory_space<vmem>>, %arg1: memref<1x1x200xf32, #tpu.memory_space<vmem>>, %arg2: memref<8x512xbf16, #tpu.memory_space<vmem>>, %arg3: memref<512x128xbf16, #tpu.memory_space<vmem>>, %arg4: memref<128x128xbf16, #tpu.memory_space<vmem>>, %arg5: memref<1x896xf32, #tpu.memory_space<vmem>>, %arg6: memref<2x128xf32, #tpu.memory_space<vmem>>) attributes {dimension_semantics = [], scalar_prefetch = 0 : i64, scratch_operands = 0 : i64, tpu.core_type = #tpu.core_type<tc>} {
    %c0 = arith.constant 0 : index
    %c0_0 = arith.constant 0 : index
    %c0_1 = arith.constant 0 : index
    %0 = vector.load %arg0[%c0, %c0_0, %c0_1] : memref<2x8x200xf32, #tpu.memory_space<vmem>>, vector<2x8x200xf32>
    %c0_2 = arith.constant 0 : index
    %c0_3 = arith.constant 0 : index
    %c0_4 = arith.constant 0 : index
    %1 = vector.load %arg1[%c0_2, %c0_3, %c0_4] : memref<1x1x200xf32, #tpu.memory_space<vmem>>, vector<1x1x200xf32>
    %2 = vector.broadcast %1 : vector<1x1x200xf32> to vector<2x8x200xf32>
    %3 = arith.mulf %0, %2 : vector<2x8x200xf32>
    %cst = arith.constant dense<0.000000e+00> : vector<2x8xf32>
    %4 = vector.multi_reduction <add>, %3, %cst [2] : vector<2x8x200xf32> to vector<2x8xf32>
    %c0_5 = arith.constant 0 : index
    %c768 = arith.constant 768 : index
    %5 = vector.load %arg5[%c0_5, %c768] : memref<1x896xf32, #tpu.memory_space<vmem>>, vector<1x1xf32>
    %6 = vector.broadcast %5 : vector<1x1xf32> to vector<2x8xf32>
    %7 = arith.addf %4, %6 : vector<2x8xf32>
    %cst_6 = arith.constant 0.000000e+00 : f32
    %8 = vector.broadcast %cst_6 : f32 to vector<2x8xf32>
    %9 = arith.maximumf %7, %8 : vector<2x8xf32>
    %10 = arith.truncf %9 : vector<2x8xf32> to vector<2x8xbf16>
    %c0_7 = arith.constant 0 : index
    %c0_8 = arith.constant 0 : index
    %11 = vector.load %arg2[%c0_7, %c0_8] : memref<8x512xbf16, #tpu.memory_space<vmem>>, vector<8x512xbf16>
    %cst_9 = arith.constant dense<0.000000e+00> : vector<2x512xf32>
    %12 = tpu.matmul %10, %11, %cst_9 {dimension_numbers = #tpu.dot_dimension_numbers<[1], [0], [0], [1], [0, 0, 1, 1], [], []>} : vector<2x8xbf16>, vector<8x512xbf16>, vector<2x512xf32> -> vector<2x512xf32>
    %c0_10 = arith.constant 0 : index
    %c0_11 = arith.constant 0 : index
    %13 = vector.load %arg5[%c0_10, %c0_11] : memref<1x896xf32, #tpu.memory_space<vmem>>, vector<1x512xf32>
    %14 = vector.broadcast %13 : vector<1x512xf32> to vector<2x512xf32>
    %15 = arith.addf %12, %14 : vector<2x512xf32>
    %cst_12 = arith.constant 0.000000e+00 : f32
    %16 = vector.broadcast %cst_12 : f32 to vector<2x512xf32>
    %17 = arith.maximumf %15, %16 : vector<2x512xf32>
    %18 = arith.truncf %17 : vector<2x512xf32> to vector<2x512xbf16>
    %c0_13 = arith.constant 0 : index
    %c0_14 = arith.constant 0 : index
    %19 = vector.load %arg3[%c0_13, %c0_14] : memref<512x128xbf16, #tpu.memory_space<vmem>>, vector<512x128xbf16>
    %cst_15 = arith.constant dense<0.000000e+00> : vector<2x128xf32>
    %20 = tpu.matmul %18, %19, %cst_15 {dimension_numbers = #tpu.dot_dimension_numbers<[1], [0], [0], [1], [0, 0, 1, 1], [], []>} : vector<2x512xbf16>, vector<512x128xbf16>, vector<2x128xf32> -> vector<2x128xf32>
    %c0_16 = arith.constant 0 : index
    %c512 = arith.constant 512 : index
    %21 = vector.load %arg5[%c0_16, %c512] : memref<1x896xf32, #tpu.memory_space<vmem>>, vector<1x128xf32>
    %22 = vector.broadcast %21 : vector<1x128xf32> to vector<2x128xf32>
    %23 = arith.addf %20, %22 : vector<2x128xf32>
    %cst_17 = arith.constant 0.000000e+00 : f32
    %24 = vector.broadcast %cst_17 : f32 to vector<2x128xf32>
    %25 = arith.maximumf %23, %24 : vector<2x128xf32>
    %26 = arith.truncf %25 : vector<2x128xf32> to vector<2x128xbf16>
    %c0_18 = arith.constant 0 : index
    %c0_19 = arith.constant 0 : index
    %27 = vector.load %arg4[%c0_18, %c0_19] : memref<128x128xbf16, #tpu.memory_space<vmem>>, vector<128x128xbf16>
    %cst_20 = arith.constant dense<0.000000e+00> : vector<2x128xf32>
    %28 = tpu.matmul %26, %27, %cst_20 {dimension_numbers = #tpu.dot_dimension_numbers<[1], [0], [0], [1], [0, 0, 1, 1], [], []>} : vector<2x128xbf16>, vector<128x128xbf16>, vector<2x128xf32> -> vector<2x128xf32>
    %c0_21 = arith.constant 0 : index
    %c640 = arith.constant 640 : index
    %29 = vector.load %arg5[%c0_21, %c640] : memref<1x896xf32, #tpu.memory_space<vmem>>, vector<1x128xf32>
    %30 = vector.broadcast %29 : vector<1x128xf32> to vector<2x128xf32>
    %31 = arith.addf %28, %30 : vector<2x128xf32>
    %c0_22 = arith.constant 0 : index
    %c0_23 = arith.constant 0 : index
    %32 = vector.load %arg6[%c0_22, %c0_23] : memref<2x128xf32, #tpu.memory_space<vmem>>, vector<2x128xf32>
    tpu.vector_store %arg6[%c0_22, %c0_23], %31 {strides = array<i32>} : memref<2x128xf32, #tpu.memory_space<vmem>>, vector<2x128xf32>,
    return
  }
}

</mosaic_0001>

<llo_original>
// kernel: out_cnn_forward.1
$region0: #{out_cnn_forward.1}
  #allocation0 [shape = 'u32[]', space=smem, size = 0x4, offset = 0x4, fixed_abs, tag = 'smem constant byte address 0x4 - core index']
  #allocation1 [shape = 'u32[144,128]{1,0:T(1,128)}', space=vmem, size = 0x12000, scoped, tag = 'internal scratch']
  %s0 = inlined_call_operand.hbm [shape: f32[2,8,200], index: 0, kind: input, shape index: {}]
  %s1 = inlined_call_operand.vmem [shape: f32[1,1,200], index: 1, kind: input, shape index: {}]
  %s2 = inlined_call_operand.hbm [shape: bf16[8,512], index: 2, kind: input, shape index: {}]
  %s3 = inlined_call_operand.hbm [shape: bf16[512,128], index: 3, kind: input, shape index: {}]
  %s4 = inlined_call_operand.hbm [shape: bf16[128,128], index: 4, kind: input, shape index: {}]
  %s5 = inlined_call_operand.vmem [shape: f32[1,896], index: 5, kind: input, shape index: {}]
  %s6 = inlined_call_operand.hbm [shape: f32[2,128], index: 6, kind: output, shape index: {}]
  %s7 = sld [smem:[#allocation0]]
  $region50: #{out_cnn_forward.1} parent=0
    _
  %s9 = ssub.s32 1, %s7
  %s10 = scalar_select 0, %s9, %s7
  $region1: #{out_cnn_forward.1} parent=0
    #allocation2 [shape = 'u8[16384]{0}', space=vmem, size = 0x4000, scoped, tag = 'input window, operand 0, single buffered']
    #allocation3 [shape = 's32[1]{0}', space=sflag, size = 0x4, scoped, tag = 'scoped memory for out_cnn_forward.1']
    #allocation4 [shape = 's32[1]{0}', space=sflag, size = 0x4, scoped, tag = 'scoped memory for out_cnn_forward.1']
    #allocation5 [shape = 'u8[8192]{0}', space=vmem, size = 0x2000, scoped, tag = 'input window, operand 2, single buffered']
    #allocation6 [shape = 's32[1]{0}', space=sflag, size = 0x4, scoped, tag = 'scoped memory for out_cnn_forward.1']
    #allocation7 [shape = 'u8[131072]{0}', space=vmem, size = 0x20000, scoped, tag = 'input window, operand 3, single buffered']
    #allocation8 [shape = 'u8[32768]{0}', space=vmem, size = 0x8000, scoped, tag = 'input window, operand 4, single buffered']
    #allocation9 [shape = 's32[1]{0}', space=sflag, size = 0x4, scoped, tag = 'scoped memory for out_cnn_forward.1']
    #allocation10 [shape = 'u8[1024]{0}', space=vmem, size = 0x400, scoped, tag = 'output window, operand 0, single buffered']
    %11 = vsyncpa [#allocation3], 0
    %12 = vsyncpa [#allocation6], 0
    %13 = vsyncpa [#allocation9], 0
    %14 = vsyncpa [#allocation4], 0
    // Predicated region
    $region2: #{out_cnn_forward.1} parent=1 // pred_check
      _
    $region3: #{out_cnn_forward.1} parent=1 // pred_check_branch
      %16 = sbr.rel (0) target = $region5
    $region4: #{out_cnn_forward.1} parent=1 // pred_region
      %s18 = ssub.s32 512, 512
      %19 = vsyncadd [#allocation3], %s18
      %s20 = sshll.u32 [#allocation2], 4
      %s21 = int_to_ptr.vmem [resolvable:$true] %s20
      %26 = dma.hbm_to_vmem [thread:$0]  %s0, 512, %s21, [#allocation3], 256, 256, 16
    $region5: #{out_cnn_forward.1} parent=1 // pred_fallthru
      _
    // Predicated region
    $region6: #{out_cnn_forward.1} parent=1 // pred_check
      _
    $region7: #{out_cnn_forward.1} parent=1 // pred_check_branch
      %28 = sbr.rel (0) target = $region9
    $region8: #{out_cnn_forward.1} parent=1 // pred_region
      _
    $region9: #{out_cnn_forward.1} parent=1 // pred_fallthru
      _
    // Predicated region
    $region10: #{out_cnn_forward.1} parent=1 // pred_check
      _
    $region11: #{out_cnn_forward.1} parent=1 // pred_check_branch
      %30 = sbr.rel (0) target = $region13
    $region12: #{out_cnn_forward.1} parent=1 // pred_region
      %s32 = ssub.s32 256, 256
      %33 = vsyncadd [#allocation6], %s32
      %s35 = sshll.u32 [#allocation5], 4
      %s36 = int_to_ptr.vmem [resolvable:$true] %s35
      %38 = dma.hbm_to_vmem [thread:$0]  %s2, 256, %s36, [#allocation6]
    $region13: #{out_cnn_forward.1} parent=1 // pred_fallthru
      _
    // Predicated region
    $region14: #{out_cnn_forward.1} parent=1 // pred_check
      _
    $region15: #{out_cnn_forward.1} parent=1 // pred_check_branch
      %40 = sbr.rel (0) target = $region17
    $region16: #{out_cnn_forward.1} parent=1 // pred_region
      %s42 = ssub.s32 4096, 4096
      %43 = vsyncadd [#allocation6], %s42
      %s44 = sshll.u32 [#allocation7], 4
      %s45 = int_to_ptr.vmem [resolvable:$true] %s44
      %50 = dma.hbm_to_vmem [thread:$0]  %s3, 4096, %s45, [#allocation6], 64, 64, 4
    $region17: #{out_cnn_forward.1} parent=1 // pred_fallthru
      _
    // Predicated region
    $region18: #{out_cnn_forward.1} parent=1 // pred_check
      _
    $region19: #{out_cnn_forward.1} parent=1 // pred_check_branch
      %52 = sbr.rel (0) target = $region21
    $region20: #{out_cnn_forward.1} parent=1 // pred_region
      %s54 = ssub.s32 1024, 1024
      %55 = vsyncadd [#allocation9], %s54
      %s56 = sshll.u32 [#allocation8], 4
      %s57 = int_to_ptr.vmem [resolvable:$true] %s56
      %62 = dma.hbm_to_vmem [thread:$0]  %s4, 1024, %s57, [#allocation9], 64, 64, 4
    $region21: #{out_cnn_forward.1} parent=1 // pred_fallthru
      _
    // Predicated region
    $region22: #{out_cnn_forward.1} parent=1 // pred_check
      _
    $region23: #{out_cnn_forward.1} parent=1 // pred_check_branch
      %64 = sbr.rel (0) target = $region25
    $region24: #{out_cnn_forward.1} parent=1 // pred_region
      _
    $region25: #{out_cnn_forward.1} parent=1 // pred_fallthru
      _
    // Predicated region
    $region26: #{out_cnn_forward.1} parent=1 // pred_check
      _
    $region27: #{out_cnn_forward.1} parent=1 // pred_check_branch
      %66 = sbr.rel (0) target = $region29
    $region28: #{out_cnn_forward.1} parent=1 // pred_region
      %67 = dma.done [#allocation3], 512
    $region29: #{out_cnn_forward.1} parent=1 // pred_fallthru
      _
    // Predicated region
    $region30: #{out_cnn_forward.1} parent=1 // pred_check
      _
    $region31: #{out_cnn_forward.1} parent=1 // pred_check_branch
      %69 = sbr.rel (0) target = $region33
    $region32: #{out_cnn_forward.1} parent=1 // pred_region
      %70 = dma.done [#allocation6], 256
    $region33: #{out_cnn_forward.1} parent=1 // pred_fallthru
      _
    // Predicated region
    $region34: #{out_cnn_forward.1} parent=1 // pred_check
      _
    $region35: #{out_cnn_forward.1} parent=1 // pred_check_branch
      %72 = sbr.rel (0) target = $region37
    $region36: #{out_cnn_forward.1} parent=1 // pred_region
      %73 = dma.done [#allocation6], 4096
    $region37: #{out_cnn_forward.1} parent=1 // pred_fallthru
      _
    // Predicated region
    $region38: #{out_cnn_forward.1} parent=1 // pred_check
      _
    $region39: #{out_cnn_forward.1} parent=1 // pred_check_branch
      %75 = sbr.rel (0) target = $region41
    $region40: #{out_cnn_forward.1} parent=1 // pred_region
      %76 = dma.done [#allocation9], 1024
    $region41: #{out_cnn_forward.1} parent=1 // pred_fallthru
      _
    %v78 = vld [vmem:[#allocation2] sm:$0xff]
    %v79 = vld [vmem:[#allocation2 + $0x8] sm:$0xff]
    %v80 = vld [vmem:[#allocation2 + $0x10] sm:$0xff]
    %v81 = vld [vmem:[#allocation2 + $0x18] sm:$0xff]
    %v82 = vld [vmem:[%s1] sm:$0x3]
    %v84 = vlaneseq
    %v85 = vshrl.u32 %v84, 7
    %v86 = vsub.s32 0, %v85
    %v87 = vrot.slane %v82, %v86
    %v88 = vlaneseq
    %v89 = vshrl.u32 %v88, 7
    %v90 = vsub.s32 1, %v89
    %v91 = vrot.slane %v82, %v90
    %v94 = vmul.f32 %v78, %v87
    %v95 = vmul.f32 %v79, %v91
    %v96 = vmul.f32 %v80, %v87
    %v97 = vmul.f32 %v81, %v91
    %vm98 = vcmask 588800
    %v99 = vsel %vm98, %v95, 0.0
    %v100 = vadd.f32 %v94, %v99
    %101 = vadd.xlane.f32.xlu0 %v100
    %v102 = vpop.xlane.xlu0 %101
    %v103 = vsel %vm98, %v97, 0.0
    %v104 = vadd.f32 %v96, %v103
    %105 = vadd.xlane.f32.xlu0 %v104
    %v106 = vpop.xlane.xlu0 %105
    %v107 = vld [vmem:[%s5 + $0x6] sm:$0x1]
    %v109 = vlaneseq
    %v110 = vshrl.u32 %v109, 7
    %v111 = vsub.s32 0, %v110
    %v112 = vrot.slane %v107, %v111
    %113 = vset.pattern.permute.xlu0 0
    %114 = vperm.xlu0 %113, %v112
    %v115 = vpop.permute.xlu0 %114
    %v117 = vadd.f32 %v102, %v115
    %v118 = vadd.f32 %v106, %v115
    %v119 = vmax.f32 %v117, 0.0
    %v120 = vmax.f32 %v118, 0.0
    %v121 = vpack.c.bf16 %v119, %v119
    %v122 = vpack.c.bf16 %v120, %v120
    %v123 = vld [vmem:[#allocation5] sm:$0xff]
    %v124 = vld [vmem:[#allocation5 + $0x8] sm:$0xff]
    %v125 = vld [vmem:[%s5] sm:$0xf]
    %v127 = vlaneseq
    %v128 = vshrl.u32 %v127, 7
    %v129 = vsub.s32 0, %v128
    %v130 = vrot.slane %v125, %v129
    %v131 = vlaneseq
    %v132 = vshrl.u32 %v131, 7
    %v133 = vsub.s32 1, %v132
    %v134 = vrot.slane %v125, %v133
    %v135 = vlaneseq
    %v136 = vshrl.u32 %v135, 7
    %v137 = vsub.s32 2, %v136
    %v138 = vrot.slane %v125, %v137
    %v139 = vlaneseq
    %v140 = vshrl.u32 %v139, 7
    %v141 = vsub.s32 3, %v140
    %v142 = vrot.slane %v125, %v141
    %v149 = vunpack.c.l.b16 %v121
    %v150 = vunpack.c.l.b16 %v122
    %v151 = vlaneseq
    %v152 = vand.u32 %v151, 127
    %v153 = vlaneseq
    %v154 = vshrl.u32 %v153, 7
    %v155 = vsub.s32 %v152, %v154
    %v156 = vrot.slane %v149, %v155
    %v157 = vlaneseq
    %v158 = vshrl.u32 %v157, 7
    %v159 = vsub.s32 %v152, %v158
    %v160 = vrot.slane %v150, %v159
    %vm161 = vcmask 1041409
    %v162 = vsel %vm161, %v160, %v156
    %v163 = vpack.c.b16 %v162, %v162
    %v166 = vunpack.c.l.b16 %v123
    %v167 = vunpack.c.h.b16 %v123
    %v168 = vunpack.c.l.b16 %v124
    %v169 = vunpack.c.h.b16 %v124
    %v170 = vpack.c.b16 %v166, %v166
    %v171 = vpack.c.b16 %v167, %v167
    %v172 = vpack.c.b16 %v168, %v168
    %v173 = vpack.c.b16 %v169, %v169
    %vm174 = vcmask 64512
    %v176 = vsel %vm174, %v163, 0
    %vm178 = vcmask 1043456
    %v180 = vsel %vm178, %v170, 0
    %v183 = vsel %vm178, %v171, 0
    %v186 = vsel %vm178, %v172, 0
    %v189 = vsel %vm178, %v173, 0
    %191 = vmatprep.subr.bf16.mxu0 %v183
    %192 = vmatpush1.bf16.msra.mxu0 %v180
    %193 = vmatprep.subr.bf16.mxu0 0
    %194 = vmatpush1.bf16.msra.mxu0 0
    %195 = vmatprep.subr.bf16.mxu0 0
    %196 = vmatpush1.bf16.msra.mxu0 0
    %197 = vmatprep.subr.bf16.mxu0 0
    %198 = vmatpush1.bf16.msra.mxu0 0
    %199 = vmatprep.subr.bf16.mxu0 0
    %200 = vmatpush1.bf16.msra.mxu0 0
    %201 = vmatprep.subr.bf16.mxu0 0
    %202 = vmatpush1.bf16.msra.mxu0 0
    %203 = vmatprep.subr.bf16.mxu0 0
    %204 = vmatpush1.bf16.msra.mxu0 0
    %205 = vmatprep.subr.bf16.mxu0 0
    %206 = vmatpush1.bf16.msra.mxu0 0
    %207 = vmatprep.subr.bf16.mxu0 0
    %208 = vmatpush1.bf16.msra.mxu0 0
    %209 = vmatprep.subr.bf16.mxu0 0
    %210 = vmatpush1.bf16.msra.mxu0 0
    %211 = vmatprep.subr.bf16.mxu0 0
    %212 = vmatpush1.bf16.msra.mxu0 0
    %213 = vmatprep.subr.bf16.mxu0 0
    %214 = vmatpush1.bf16.msra.mxu0 0
    %215 = vmatprep.subr.bf16.mxu0 0
    %216 = vmatpush1.bf16.msra.mxu0 0
    %217 = vmatprep.subr.bf16.mxu0 0
    %218 = vmatpush1.bf16.msra.mxu0 0
    %219 = vmatprep.subr.bf16.mxu0 0
    %220 = vmatpush1.bf16.msra.mxu0 0
    %221 = vmatprep.subr.bf16.mxu0 0
    %222 = vmatpush1.bf16.msra.mxu0 0
    %223 = vmatprep.mubr.bf16.mxu0 0
    %224 = vmatmul.mubr.bf16.gmra.mrb[0].mxu0 %v176
    %v225 = vpop.f32.mrb[0].mxu0
    %v226 = vadd.f32 %v130, %v225
    %v227 = vpop.f32.mrb[0].mxu0
    %v228 = vadd.f32 %v134, %v227
    %v229 = vpop.f32.mrb[0].mxu0
    %v230 = vpop.f32.mrb[0].mxu0
    %231 = vdwg.mxu0
    %232 = vmatprep.subr.bf16.mxu0 %v189
    %233 = vmatpush1.bf16.msra.mxu0 %v186
    %234 = vmatprep.subr.bf16.mxu0 0
    %235 = vmatpush1.bf16.msra.mxu0 0
    %236 = vmatprep.subr.bf16.mxu0 0
    %237 = vmatpush1.bf16.msra.mxu0 0
    %238 = vmatprep.subr.bf16.mxu0 0
    %239 = vmatpush1.bf16.msra.mxu0 0
    %240 = vmatprep.subr.bf16.mxu0 0
    %241 = vmatpush1.bf16.msra.mxu0 0
    %242 = vmatprep.subr.bf16.mxu0 0
    %243 = vmatpush1.bf16.msra.mxu0 0
    %244 = vmatprep.subr.bf16.mxu0 0
    %245 = vmatpush1.bf16.msra.mxu0 0
    %246 = vmatprep.subr.bf16.mxu0 0
    %247 = vmatpush1.bf16.msra.mxu0 0
    %248 = vmatprep.subr.bf16.mxu0 0
    %249 = vmatpush1.bf16.msra.mxu0 0
    %250 = vmatprep.subr.bf16.mxu0 0
    %251 = vmatpush1.bf16.msra.mxu0 0
    %252 = vmatprep.subr.bf16.mxu0 0
    %253 = vmatpush1.bf16.msra.mxu0 0
    %254 = vmatprep.subr.bf16.mxu0 0
    %255 = vmatpush1.bf16.msra.mxu0 0
    %256 = vmatprep.subr.bf16.mxu0 0
    %257 = vmatpush1.bf16.msra.mxu0 0
    %258 = vmatprep.subr.bf16.mxu0 0
    %259 = vmatpush1.bf16.msra.mxu0 0
    %260 = vmatprep.subr.bf16.mxu0 0
    %261 = vmatpush1.bf16.msra.mxu0 0
    %262 = vmatprep.subr.bf16.mxu0 0
    %263 = vmatpush1.bf16.msra.mxu0 0
    %264 = vmatprep.mubr.bf16.mxu0 0
    %265 = vmatmul.mubr.bf16.gmra.mrb[0].mxu0 %v176
    %v266 = vpop.f32.mrb[0].mxu0
    %v267 = vadd.f32 %v138, %v266
    %v268 = vpop.f32.mrb[0].mxu0
    %v269 = vadd.f32 %v142, %v268
    %v270 = vpop.f32.mrb[0].mxu0
    %v271 = vpop.f32.mrb[0].mxu0
    %272 = vdwg.mxu0
    %v273 = vmax.f32 %v226, 0.0
    %v274 = vmax.f32 %v228, 0.0
    %v275 = vmax.f32 %v267, 0.0
    %v276 = vmax.f32 %v269, 0.0
    %v277 = vpack.c.bf16 %v273, %v273
    %v278 = vpack.c.bf16 %v274, %v274
    %v279 = vpack.c.bf16 %v275, %v275
    %v280 = vpack.c.bf16 %v276, %v276
    %v281 = vld [vmem:[#allocation7] sm:$0xf]
    %v282 = vld [vmem:[#allocation7 + $0x4] sm:$0xf]
    %v283 = vld [vmem:[#allocation7 + $0x8] sm:$0xf]
    %v284 = vld [vmem:[#allocation7 + $0xc] sm:$0xf]
    %v285 = vld [vmem:[#allocation7 + $0x10] sm:$0xf]
    %v286 = vld [vmem:[#allocation7 + $0x14] sm:$0xf]
    %v287 = vld [vmem:[#allocation7 + $0x18] sm:$0xf]
    %v288 = vld [vmem:[#allocation7 + $0x1c] sm:$0xf]
    %v289 = vld [vmem:[#allocation7 + $0x20] sm:$0xf]
    %v290 = vld [vmem:[#allocation7 + $0x24] sm:$0xf]
    %v291 = vld [vmem:[#allocation7 + $0x28] sm:$0xf]
    %v292 = vld [vmem:[#allocation7 + $0x2c] sm:$0xf]
    %v293 = vld [vmem:[#allocation7 + $0x30] sm:$0xf]
    %v294 = vld [vmem:[#allocation7 + $0x34] sm:$0xf]
    %v295 = vld [vmem:[#allocation7 + $0x38] sm:$0xf]
    %v296 = vld [vmem:[#allocation7 + $0x3c] sm:$0xf]
    %v297 = vld [vmem:[#allocation7 + $0x40] sm:$0xf]
    %v298 = vld [vmem:[#allocation7 + $0x44] sm:$0xf]
    %v299 = vld [vmem:[#allocation7 + $0x48] sm:$0xf]
    %v300 = vld [vmem:[#allocation7 + $0x4c] sm:$0xf]
    %v301 = vld [vmem:[#allocation7 + $0x50] sm:$0xf]
    %v302 = vld [vmem:[#allocation7 + $0x54] sm:$0xf]
    %v303 = vld [vmem:[#allocation7 + $0x58] sm:$0xf]
    %v304 = vld [vmem:[#allocation7 + $0x5c] sm:$0xf]
    %v305 = vld [vmem:[#allocation7 + $0x60] sm:$0xf]
    %v306 = vld [vmem:[#allocation7 + $0x64] sm:$0xf]
    %v307 = vld [vmem:[#allocation7 + $0x68] sm:$0xf]
    %v308 = vld [vmem:[#allocation7 + $0x6c] sm:$0xf]
    %v309 = vld [vmem:[#allocation7 + $0x70] sm:$0xf]
    %v310 = vld [vmem:[#allocation7 + $0x74] sm:$0xf]
    %v311 = vld [vmem:[#allocation7 + $0x78] sm:$0xf]
    %v312 = vld [vmem:[#allocation7 + $0x7c] sm:$0xf]
    %v313 = vld [vmem:[#allocation7 + $0x80] sm:$0xf]
    %v314 = vld [vmem:[#allocation7 + $0x84] sm:$0xf]
    %v315 = vld [vmem:[#allocation7 + $0x88] sm:$0xf]
    %v316 = vld [vmem:[#allocation7 + $0x8c] sm:$0xf]
    %v317 = vld [vmem:[#allocation7 + $0x90] sm:$0xf]
    %v318 = vld [vmem:[#allocation7 + $0x94] sm:$0xf]
    %v319 = vld [vmem:[#allocation7 + $0x98] sm:$0xf]
    %v320 = vld [vmem:[#allocation7 + $0x9c] sm:$0xf]
    %v321 = vld [vmem:[#allocation7 + $0xa0] sm:$0xf]
    %v322 = vld [vmem:[#allocation7 + $0xa4] sm:$0xf]
    %v323 = vld [vmem:[#allocation7 + $0xa8] sm:$0xf]
    %v324 = vld [vmem:[#allocation7 + $0xac] sm:$0xf]
    %v325 = vld [vmem:[#allocation7 + $0xb0] sm:$0xf]
    %v326 = vld [vmem:[#allocation7 + $0xb4] sm:$0xf]
    %v327 = vld [vmem:[#allocation7 + $0xb8] sm:$0xf]
    %v328 = vld [vmem:[#allocation7 + $0xbc] sm:$0xf]
    %v329 = vld [vmem:[#allocation7 + $0xc0] sm:$0xf]
    %v330 = vld [vmem:[#allocation7 + $0xc4] sm:$0xf]
    %v331 = vld [vmem:[#allocation7 + $0xc8] sm:$0xf]
    %v332 = vld [vmem:[#allocation7 + $0xcc] sm:$0xf]
    %v333 = vld [vmem:[#allocation7 + $0xd0] sm:$0xf]
    %v334 = vld [vmem:[#allocation7 + $0xd4] sm:$0xf]
    %v335 = vld [vmem:[#allocation7 + $0xd8] sm:$0xf]
    %v336 = vld [vmem:[#allocation7 + $0xdc] sm:$0xf]
    %v337 = vld [vmem:[#allocation7 + $0xe0] sm:$0xf]
    %v338 = vld [vmem:[#allocation7 + $0xe4] sm:$0xf]
    %v339 = vld [vmem:[#allocation7 + $0xe8] sm:$0xf]
    %v340 = vld [vmem:[#allocation7 + $0xec] sm:$0xf]
    %v341 = vld [vmem:[#allocation7 + $0xf0] sm:$0xf]
    %v342 = vld [vmem:[#allocation7 + $0xf4] sm:$0xf]
    %v343 = vld [vmem:[#allocation7 + $0xf8] sm:$0xf]
    %v344 = vld [vmem:[#allocation7 + $0xfc] sm:$0xf]
    %v345 = vld [vmem:[%s5 + $0x4] sm:$0x1]
    %v347 = vlaneseq
    %v348 = vshrl.u32 %v347, 7
    %v349 = vsub.s32 0, %v348
    %v350 = vrot.slane %v345, %v349
    %v416 = vunpack.c.l.b16 %v281
    %v417 = vunpack.c.l.b16 %v282
    %v418 = vunpack.c.l.b16 %v283
    %v419 = vunpack.c.l.b16 %v284
    %v420 = vunpack.c.l.b16 %v285
    %v421 = vunpack.c.l.b16 %v286
    %v422 = vunpack.c.l.b16 %v287
    %v423 = vunpack.c.l.b16 %v288
    %v424 = vunpack.c.l.b16 %v289
    %v425 = vunpack.c.l.b16 %v290
    %v426 = vunpack.c.l.b16 %v291
    %v427 = vunpack.c.l.b16 %v292
    %v428 = vunpack.c.l.b16 %v293
    %v429 = vunpack.c.l.b16 %v294
    %v430 = vunpack.c.l.b16 %v295
    %v431 = vunpack.c.l.b16 %v296
    %v432 = vunpack.c.l.b16 %v297
    %v433 = vunpack.c.l.b16 %v298
    %v434 = vunpack.c.l.b16 %v299
    %v435 = vunpack.c.l.b16 %v300
    %v436 = vunpack.c.l.b16 %v301
    %v437 = vunpack.c.l.b16 %v302
    %v438 = vunpack.c.l.b16 %v303
    %v439 = vunpack.c.l.b16 %v304
    %v440 = vunpack.c.l.b16 %v305
    %v441 = vunpack.c.l.b16 %v306
    %v442 = vunpack.c.l.b16 %v307
    %v443 = vunpack.c.l.b16 %v308
    %v444 = vunpack.c.l.b16 %v309
    %v445 = vunpack.c.l.b16 %v310
    %v446 = vunpack.c.l.b16 %v311
    %v447 = vunpack.c.l.b16 %v312
    %v448 = vunpack.c.l.b16 %v313
    %v449 = vunpack.c.l.b16 %v314
    %v450 = vunpack.c.l.b16 %v315
    %v451 = vunpack.c.l.b16 %v316
    %v452 = vunpack.c.l.b16 %v317
    %v453 = vunpack.c.l.b16 %v318
    %v454 = vunpack.c.l.b16 %v319
    %v455 = vunpack.c.l.b16 %v320
    %v456 = vunpack.c.l.b16 %v321
    %v457 = vunpack.c.l.b16 %v322
    %v458 = vunpack.c.l.b16 %v323
    %v459 = vunpack.c.l.b16 %v324
    %v460 = vunpack.c.l.b16 %v325
    %v461 = vunpack.c.l.b16 %v326
    %v462 = vunpack.c.l.b16 %v327
    %v463 = vunpack.c.l.b16 %v328
    %v464 = vunpack.c.l.b16 %v329
    %v465 = vunpack.c.l.b16 %v330
    %v466 = vunpack.c.l.b16 %v331
    %v467 = vunpack.c.l.b16 %v332
    %v468 = vunpack.c.l.b16 %v333
    %v469 = vunpack.c.l.b16 %v334
    %v470 = vunpack.c.l.b16 %v335
    %v471 = vunpack.c.l.b16 %v336
    %v472 = vunpack.c.l.b16 %v337
    %v473 = vunpack.c.l.b16 %v338
    %v474 = vunpack.c.l.b16 %v339
    %v475 = vunpack.c.l.b16 %v340
    %v476 = vunpack.c.l.b16 %v341
    %v477 = vunpack.c.l.b16 %v342
    %v478 = vunpack.c.l.b16 %v343
    %v479 = vunpack.c.l.b16 %v344
    %v480 = vpack.c.b16 %v417, %v416
    %v481 = vpack.c.b16 %v419, %v418
    %v482 = vpack.c.b16 %v421, %v420
    %v483 = vpack.c.b16 %v423, %v422
    %v484 = vpack.c.b16 %v425, %v424
    %v485 = vpack.c.b16 %v427, %v426
    %v486 = vpack.c.b16 %v429, %v428
    %v487 = vpack.c.b16 %v431, %v430
    %v488 = vpack.c.b16 %v433, %v432
    %v489 = vpack.c.b16 %v435, %v434
    %v490 = vpack.c.b16 %v437, %v436
    %v491 = vpack.c.b16 %v439, %v438
    %v492 = vpack.c.b16 %v441, %v440
    %v493 = vpack.c.b16 %v443, %v442
    %v494 = vpack.c.b16 %v445, %v444
    %v495 = vpack.c.b16 %v447, %v446
    %v496 = vpack.c.b16 %v449, %v448
    %v497 = vpack.c.b16 %v451, %v450
    %v498 = vpack.c.b16 %v453, %v452
    %v499 = vpack.c.b16 %v455, %v454
    %v500 = vpack.c.b16 %v457, %v456
    %v501 = vpack.c.b16 %v459, %v458
    %v502 = vpack.c.b16 %v461, %v460
    %v503 = vpack.c.b16 %v463, %v462
    %v504 = vpack.c.b16 %v465, %v464
    %v505 = vpack.c.b16 %v467, %v466
    %v506 = vpack.c.b16 %v469, %v468
    %v507 = vpack.c.b16 %v471, %v470
    %v508 = vpack.c.b16 %v473, %v472
    %v509 = vpack.c.b16 %v475, %v474
    %v510 = vpack.c.b16 %v477, %v476
    %v511 = vpack.c.b16 %v479, %v478
    %544 = vmatprep.subr.bf16.mxu0 0
    %545 = vmatpush1.bf16.msra.mxu0 %v480
    %546 = vmatprep.subr.bf16.mxu0 0
    %547 = vmatpush1.bf16.msra.mxu0 %v481
    %548 = vmatprep.subr.bf16.mxu0 0
    %549 = vmatpush1.bf16.msra.mxu0 %v482
    %550 = vmatprep.subr.bf16.mxu0 0
    %551 = vmatpush1.bf16.msra.mxu0 %v483
    %552 = vmatprep.subr.bf16.mxu0 0
    %553 = vmatpush1.bf16.msra.mxu0 %v484
    %554 = vmatprep.subr.bf16.mxu0 0
    %555 = vmatpush1.bf16.msra.mxu0 %v485
    %556 = vmatprep.subr.bf16.mxu0 0
    %557 = vmatpush1.bf16.msra.mxu0 %v486
    %558 = vmatprep.subr.bf16.mxu0 0
    %559 = vmatpush1.bf16.msra.mxu0 %v487
    %560 = vmatprep.subr.bf16.mxu0 0
    %561 = vmatpush1.bf16.msra.mxu0 %v488
    %562 = vmatprep.subr.bf16.mxu0 0
    %563 = vmatpush1.bf16.msra.mxu0 %v489
    %564 = vmatprep.subr.bf16.mxu0 0
    %565 = vmatpush1.bf16.msra.mxu0 %v490
    %566 = vmatprep.subr.bf16.mxu0 0
    %567 = vmatpush1.bf16.msra.mxu0 %v491
    %568 = vmatprep.subr.bf16.mxu0 0
    %569 = vmatpush1.bf16.msra.mxu0 %v492
    %570 = vmatprep.subr.bf16.mxu0 0
    %571 = vmatpush1.bf16.msra.mxu0 %v493
    %572 = vmatprep.subr.bf16.mxu0 0
    %573 = vmatpush1.bf16.msra.mxu0 %v494
    %574 = vmatprep.subr.bf16.mxu0 0
    %575 = vmatpush1.bf16.msra.mxu0 %v495
    %576 = vmatprep.mubr.bf16.mxu0 %v278
    %577 = vmatmul.mubr.bf16.gmra.mrb[0].mxu0 %v277
    %v578 = vpop.f32.mrb[0].mxu0
    %v579 = vadd.f32 %v350, %v578
    %v580 = vpop.f32.mrb[0].mxu0
    %v581 = vpop.f32.mrb[0].mxu0
    %v582 = vpop.f32.mrb[0].mxu0
    %583 = vdwg.mxu0
    %584 = vmatprep.subr.bf16.mxu0 0
    %585 = vmatpush1.bf16.msra.mxu0 %v496
    %586 = vmatprep.subr.bf16.mxu0 0
    %587 = vmatpush1.bf16.msra.mxu0 %v497
    %588 = vmatprep.subr.bf16.mxu0 0
    %589 = vmatpush1.bf16.msra.mxu0 %v498
    %590 = vmatprep.subr.bf16.mxu0 0
    %591 = vmatpush1.bf16.msra.mxu0 %v499
    %592 = vmatprep.subr.bf16.mxu0 0
    %593 = vmatpush1.bf16.msra.mxu0 %v500
    %594 = vmatprep.subr.bf16.mxu0 0
    %595 = vmatpush1.bf16.msra.mxu0 %v501
    %596 = vmatprep.subr.bf16.mxu0 0
    %597 = vmatpush1.bf16.msra.mxu0 %v502
    %598 = vmatprep.subr.bf16.mxu0 0
    %599 = vmatpush1.bf16.msra.mxu0 %v503
    %600 = vmatprep.subr.bf16.mxu0 0
    %601 = vmatpush1.bf16.msra.mxu0 %v504
    %602 = vmatprep.subr.bf16.mxu0 0
    %603 = vmatpush1.bf16.msra.mxu0 %v505
    %604 = vmatprep.subr.bf16.mxu0 0
    %605 = vmatpush1.bf16.msra.mxu0 %v506
    %606 = vmatprep.subr.bf16.mxu0 0
    %607 = vmatpush1.bf16.msra.mxu0 %v507
    %608 = vmatprep.subr.bf16.mxu0 0
    %609 = vmatpush1.bf16.msra.mxu0 %v508
    %610 = vmatprep.subr.bf16.mxu0 0
    %611 = vmatpush1.bf16.msra.mxu0 %v509
    %612 = vmatprep.subr.bf16.mxu0 0
    %613 = vmatpush1.bf16.msra.mxu0 %v510
    %614 = vmatprep.subr.bf16.mxu0 0
    %615 = vmatpush1.bf16.msra.mxu0 %v511
    %616 = vmatprep.mubr.bf16.mxu0 %v280
    %617 = vmatmul.mubr.bf16.gmra.mrb[0].mxu0 %v279
    %v618 = vpop.f32.mrb[0].mxu0
    %v619 = vadd.f32 %v579, %v618
    %v620 = vpop.f32.mrb[0].mxu0
    %v621 = vpop.f32.mrb[0].mxu0
    %v622 = vpop.f32.mrb[0].mxu0
    %623 = vdwg.mxu0
    %v624 = vmax.f32 %v619, 0.0
    %v625 = vpack.c.bf16 %v624, %v624
    %v626 = vld [vmem:[#allocation8] sm:$0xf]
    %v627 = vld [vmem:[#allocation8 + $0x4] sm:$0xf]
    %v628 = vld [vmem:[#allocation8 + $0x8] sm:$0xf]
    %v629 = vld [vmem:[#allocation8 + $0xc] sm:$0xf]
    %v630 = vld [vmem:[#allocation8 + $0x10] sm:$0xf]
    %v631 = vld [vmem:[#allocation8 + $0x14] sm:$0xf]
    %v632 = vld [vmem:[#allocation8 + $0x18] sm:$0xf]
    %v633 = vld [vmem:[#allocation8 + $0x1c] sm:$0xf]
    %v634 = vld [vmem:[#allocation8 + $0x20] sm:$0xf]
    %v635 = vld [vmem:[#allocation8 + $0x24] sm:$0xf]
    %v636 = vld [vmem:[#allocation8 + $0x28] sm:$0xf]
    %v637 = vld [vmem:[#allocation8 + $0x2c] sm:$0xf]
    %v638 = vld [vmem:[#allocation8 + $0x30] sm:$0xf]
    %v639 = vld [vmem:[#allocation8 + $0x34] sm:$0xf]
    %v640 = vld [vmem:[#allocation8 + $0x38] sm:$0xf]
    %v641 = vld [vmem:[#allocation8 + $0x3c] sm:$0xf]
    %v642 = vld [vmem:[%s5 + $0x5] sm:$0x1]
    %v644 = vlaneseq
    %v645 = vshrl.u32 %v644, 7
    %v646 = vsub.s32 0, %v645
    %v647 = vrot.slane %v642, %v646
    %v665 = vunpack.c.l.b16 %v626
    %v666 = vunpack.c.l.b16 %v627
    %v667 = vunpack.c.l.b16 %v628
    %v668 = vunpack.c.l.b16 %v629
    %v669 = vunpack.c.l.b16 %v630
    %v670 = vunpack.c.l.b16 %v631
    %v671 = vunpack.c.l.b16 %v632
    %v672 = vunpack.c.l.b16 %v633
    %v673 = vunpack.c.l.b16 %v634
    %v674 = vunpack.c.l.b16 %v635
    %v675 = vunpack.c.l.b16 %v636
    %v676 = vunpack.c.l.b16 %v637
    %v677 = vunpack.c.l.b16 %v638
    %v678 = vunpack.c.l.b16 %v639
    %v679 = vunpack.c.l.b16 %v640
    %v680 = vunpack.c.l.b16 %v641
    %v681 = vpack.c.b16 %v666, %v665
    %v682 = vpack.c.b16 %v668, %v667
    %v683 = vpack.c.b16 %v670, %v669
    %v684 = vpack.c.b16 %v672, %v671
    %v685 = vpack.c.b16 %v674, %v673
    %v686 = vpack.c.b16 %v676, %v675
    %v687 = vpack.c.b16 %v678, %v677
    %v688 = vpack.c.b16 %v680, %v679
    %697 = vmatprep.subr.bf16.mxu0 0
    %698 = vmatpush1.bf16.msra.mxu0 %v681
    %699 = vmatprep.subr.bf16.mxu0 0
    %700 = vmatpush1.bf16.msra.mxu0 %v682
    %701 = vmatprep.subr.bf16.mxu0 0
    %702 = vmatpush1.bf16.msra.mxu0 %v683
    %703 = vmatprep.subr.bf16.mxu0 0
    %704 = vmatpush1.bf16.msra.mxu0 %v684
    %705 = vmatprep.subr.bf16.mxu0 0
    %706 = vmatpush1.bf16.msra.mxu0 %v685
    %707 = vmatprep.subr.bf16.mxu0 0
    %708 = vmatpush1.bf16.msra.mxu0 %v686
    %709 = vmatprep.subr.bf16.mxu0 0
    %710 = vmatpush1.bf16.msra.mxu0 %v687
    %711 = vmatprep.subr.bf16.mxu0 0
    %712 = vmatpush1.bf16.msra.mxu0 %v688
    %713 = vmatprep.subr.bf16.mxu0 0
    %714 = vmatpush1.bf16.msra.mxu0 0
    %715 = vmatprep.subr.bf16.mxu0 0
    %716 = vmatpush1.bf16.msra.mxu0 0
    %717 = vmatprep.subr.bf16.mxu0 0
    %718 = vmatpush1.bf16.msra.mxu0 0
    %719 = vmatprep.subr.bf16.mxu0 0
    %720 = vmatpush1.bf16.msra.mxu0 0
    %721 = vmatprep.subr.bf16.mxu0 0
    %722 = vmatpush1.bf16.msra.mxu0 0
    %723 = vmatprep.subr.bf16.mxu0 0
    %724 = vmatpush1.bf16.msra.mxu0 0
    %725 = vmatprep.subr.bf16.mxu0 0
    %726 = vmatpush1.bf16.msra.mxu0 0
    %727 = vmatprep.subr.bf16.mxu0 0
    %728 = vmatpush1.bf16.msra.mxu0 0
    %729 = vmatprep.mubr.bf16.mxu0 0
    %730 = vmatmul.mubr.bf16.gmra.mrb[0].mxu0 %v625
    %v731 = vpop.f32.mrb[0].mxu0
    %v732 = vadd.f32 %v647, %v731
    %v733 = vpop.f32.mrb[0].mxu0
    %v734 = vpop.f32.mrb[0].mxu0
    %v735 = vpop.f32.mrb[0].mxu0
    %736 = vdwg.mxu0
    %737 = vst [vmem:[#allocation10] sm:$0x3] %v732
    // Predicated region
    $region42: #{out_cnn_forward.1} parent=1 // pred_check
      _
    $region43: #{out_cnn_forward.1} parent=1 // pred_check_branch
      %739 = sbr.rel (0) target = $region45
    $region44: #{out_cnn_forward.1} parent=1 // pred_region
      %s741 = ssub.s32 32, 32
      %742 = vsyncadd [#allocation4], %s741
      %s744 = sshll.u32 [#allocation10], 4
      %s745 = int_to_ptr.vmem [resolvable:$true] %s744
      %747 = dma.vmem_to_hbm [thread:$0]  %s745, 32, %s6, [#allocation4]
    $region45: #{out_cnn_forward.1} parent=1 // pred_fallthru
      _
    // Predicated region
    $region46: #{out_cnn_forward.1} parent=1 // pred_check
      _
    $region47: #{out_cnn_forward.1} parent=1 // pred_check_branch
      %749 = sbr.rel (0) target = $region49
    $region48: #{out_cnn_forward.1} parent=1 // pred_region
      %750 = dma.done [#allocation4], 32
    $region49: #{out_cnn_forward.1} parent=1 // pred_fallthru
      _
    %751 = vsyncpa [#allocation3], 1
    %752 = vsyncpa [#allocation6], 1
    %753 = vsyncpa [#allocation9], 1
    %754 = vsyncpa [#allocation4], 1

</llo_original>
